<compile_context>
chip_gen: v6e
topology: v6e:2x2x1
jax: 0.10.0
libtpu: 0.0.40
codegen_flags: <defaults>
</compile_context>

<pallas_src>
import math

import jax
import jax.numpy as jnp
from jax.experimental import pallas as pl
from jax.experimental.pallas import tpu as pltpu

_LN_EPS = 1e-5  # nn.LayerNorm default


# -----------------------------------------------------------------------------
# sincos positional embedding (matches torch get_1d_sincos_pos_embed)
# -----------------------------------------------------------------------------
def get_1d_sincos_pos_embed(embed_dim, grid_size, temperature=10000.0, sep_embed=False):
    assert embed_dim % 2 == 0
    grid = jnp.arange(grid_size, dtype=jnp.float32)
    omega = jnp.arange(embed_dim // 2, dtype=jnp.float32) / (embed_dim / 2.0)
    omega = 1.0 / (temperature ** omega)
    out = grid[:, None] * omega[None, :]
    pe = jnp.concatenate([jnp.sin(out), jnp.cos(out)], axis=1)
    if sep_embed:
        pe = jnp.concatenate(
            [jnp.zeros((1, embed_dim), jnp.float32), pe, jnp.zeros((1, embed_dim), jnp.float32)],
            axis=0)
    return pe


# -----------------------------------------------------------------------------
# small helpers
# -----------------------------------------------------------------------------
def _round_up(x, m):
    return (x + m - 1) // m * m


def _row_tile(rows, max_tile=2048):
    padded = _round_up(rows, 8)
    tile = min(max_tile, padded)
    padded = _round_up(padded, tile)
    return tile, padded


def _pick_seq_block(batch, seq, max_tokens=1024):
    """Sequences per grid block.

    No forced splitting: on single-TC chips (v5e/v6e) extra parallel-axis steps only
    re-DMA every layer's weights and add per-step overhead.  The token budget
    (~1024) keeps the per-block activation footprint within the VMEM budget
    (re-derived for v7x's 64 MiB).
    """
    bs = max(1, min(batch, max_tokens // max(seq, 1)))
    while batch % bs:
        bs -= 1
    return bs


def _stack_vmem_limit(bs, t_pad, d, inner, hidden, d_out):
    """Rough VMEM budget for the fused stack kernel (double-buffered weights +
    resident activations + f32 intermediates), with headroom, capped at 64 MiB so
    the request is valid on every chip generation."""
    tokens = bs * t_pad
    acts = tokens * (4 * d * 3 + 2 * 3 * inner + 2 * inner + 4 * hidden
                     + 4 * t_pad + 4 * max(d, d_out))
    wts = 2 * 2 * (d * 3 * inner + inner * d + d * hidden + hidden * d)   # bf16, 2x buffered
    io = 2 * 4 * tokens * (d + d_out)
    est = acts + wts + io
    return int(min(64 * (1 << 20), max(32 * (1 << 20), 2 * est)))


def _ln(x, g, b):
    x = x.astype(jnp.float32)
    mu = jnp.mean(x, axis=-1, keepdims=True)
    var = jnp.mean(jnp.square(x - mu), axis=-1, keepdims=True)
    return (x - mu) * jax.lax.rsqrt(var + _LN_EPS) * g + b


# -----------------------------------------------------------------------------
# Pallas kernels
# -----------------------------------------------------------------------------
def _patch_embed_kernel(x_ref, g0_ref, b0_ref, w_ref, b_ref, g1_ref, b1_ref, o_ref):
    # x block: (rows_tile, patch) -> o block: (rows_tile, D)
    h = _ln(x_ref[...], g0_ref[...], b0_ref[...])
    h = jnp.dot(h.astype(jnp.bfloat16), w_ref[...],
                preferred_element_type=jnp.float32) + b_ref[...]
    o_ref[...] = _ln(h, g1_ref[...], b1_ref[...])


def _make_stack_kernel(bs, t_pad, t_valid, d, heads, dim_head, d_out):
    """Fused transformer-layer stack + final LN/Linear epilogue.

    grid = (seq_blocks, layers); acc scratch holds the residual stream in VMEM
    across all layers; the epilogue (enc_norm+dec_embed / dec_norm+head) runs
    only on the last layer and writes the (bs, t_pad, d_out) output block.
    """
    inner = heads * dim_head
    scale = dim_head ** -0.5
    rows = bs * t_pad
    need_mask = t_pad != t_valid

    def kernel(x_ref, ln1w, ln1b, wqkv_r, bqkv_r, wo_r, bo_r,
               ln2w, ln2b, w1_r, b1_r, w2_r, b2_r,
               fg_r, fb_r, fw_r, fwb_r, o_ref, acc_ref):
        layer = pl.program_id(1)

        @pl.when(layer == 0)
        def _():
            acc_ref[...] = x_ref[...].astype(jnp.float32)

        x2 = acc_ref[...].reshape(rows, d)                       # (tokens, D) f32

        # --- pre-norm multi-head self-attention ---
        h = _ln(x2, ln1w[0], ln1b[0])
        # single bf16 cast of qkv right after projection+bias (halves the buffer,
        # removes repeated per-head casts)
        qkv = (jnp.dot(h.astype(jnp.bfloat16), wqkv_r[0],
                       preferred_element_type=jnp.float32) + bqkv_r[0]).astype(jnp.bfloat16)

        if need_mask:
            key_ok = jax.lax.broadcasted_iota(jnp.int32, (1, 1, t_pad), 2) < t_valid

        # Per-head softmax(QK^T)V, batched over the sequences in the block.
        # TODO(synk): the 64-lane qkv slices cost XLU relayout at dim_head=64; a fully
        #             head-batched 4-D dot would remove them once verified on Mosaic.
        head_outs = []
        for hh in range(heads):
            q0 = hh * dim_head
            qh = qkv[:, q0:q0 + dim_head].reshape(bs, t_pad, dim_head)
            kh = qkv[:, inner + q0:inner + q0 + dim_head].reshape(bs, t_pad, dim_head)
            vh = qkv[:, 2 * inner + q0:2 * inner + q0 + dim_head].reshape(bs, t_pad, dim_head)

            s = jnp.einsum('bqd,bkd->bqk', qh, kh,
                           preferred_element_type=jnp.float32) * scale
            if need_mask:
                s = jnp.where(key_ok, s, -1e30)
            s = s - jnp.max(s, axis=-1, keepdims=True)
            e = jnp.exp(s)
            p = e * pl.reciprocal(jnp.sum(e, axis=-1, keepdims=True), approx=True)
            oh = jnp.einsum('bqk,bkd->bqd', p.astype(jnp.bfloat16), vh,
                            preferred_element_type=jnp.float32)
            head_outs.append(oh.reshape(rows, dim_head))

        # one lane-aligned (tokens, inner) slab -> ONE Wo matmul (no per-head K=64 dots)
        if len(head_outs) > 1:
            att_in = jnp.concatenate(head_outs, axis=-1).astype(jnp.bfloat16)
        else:
            att_in = head_outs[0].astype(jnp.bfloat16)
        x2 = x2 + jnp.dot(att_in, wo_r[0], preferred_element_type=jnp.float32) + bo_r[0]

        # --- pre-norm MLP ---
        h2 = _ln(x2, ln2w[0], ln2b[0])
        m = jnp.dot(h2.astype(jnp.bfloat16), w1_r[0],
                    preferred_element_type=jnp.float32) + b1_r[0]
        # TODO(synk): torch nn.GELU is erf-exact; tanh approximation kept for Mosaic-safe lowering.
        m = jax.nn.gelu(m, approximate=True)
        m = jnp.dot(m.astype(jnp.bfloat16), w2_r[0],
                    preferred_element_type=jnp.float32) + b2_r[0]

        y = x2 + m                                               # (tokens, D) f32
        acc_ref[...] = y.reshape(bs, t_pad, d)

        # --- fused epilogue: final LayerNorm + Linear, last layer only ---
        @pl.when(layer == pl.num_programs(1) - 1)
        def _():
            hf = _ln(y, fg_r[...], fb_r[...])
            out = jnp.dot(hf.astype(jnp.bfloat16), fw_r[...],
                          preferred_element_type=jnp.float32) + fwb_r[...]
            o_ref[...] = out.reshape(bs, t_pad, d_out).astype(o_ref.dtype)

    return kernel


def _loss_kernel(pred_ref, tgt_ref, mask_ref, o_ref, num_ref, den_ref):
    # lane-dense (tile, 128) blocks; streaming sum(m * d^2) and sum(m)
    @pl.when(pl.program_id(0) == 0)
    def _():
        num_ref[...] = jnp.zeros_like(num_ref)
        den_ref[...] = jnp.zeros_like(den_ref)

    d = pred_ref[...] - tgt_ref[...]
    m = mask_ref[...]
    num_ref[...] += jnp.sum(jnp.sum(m * d * d, axis=-1, keepdims=True), axis=0, keepdims=True)
    den_ref[...] += jnp.sum(jnp.sum(m, axis=-1, keepdims=True), axis=0, keepdims=True)

    @pl.when(pl.program_id(0) == pl.num_programs(0) - 1)
    def _():
        # deviation from torch: mask.sum()==0 yields 0 instead of NaN
        o_ref[...] = num_ref[...] / jnp.maximum(den_ref[...], 1e-12)


# -----------------------------------------------------------------------------
# Pallas wrappers
# -----------------------------------------------------------------------------
_BLOCK_KEYS = ('ln1_w', 'ln1_b', 'wqkv', 'bqkv', 'wo', 'bo',
               'ln2_w', 'ln2_b', 'w1', 'b1', 'w2', 'b2')
_BF16_KEYS = ('wqkv', 'wo', 'w1', 'w2')


def _stack_layer_params(blocks):
    """Stack per-layer params along a leading layer axis; cast matmul weights to bf16."""
    stacked = {}
    for k in _BLOCK_KEYS:
        w = jnp.stack([blk[k] for blk in blocks], axis=0)
        if k in _BF16_KEYS:
            w = w.astype(jnp.bfloat16)
        stacked[k] = w
    return stacked


def patch_embed(x2d, params):
    # x2d: (tokens, patch) -> (tokens, D);  LN(patch) -> Linear -> LN(D), large row tiles
    rows, p = x2d.shape
    D = params['patch_w'].shape[1]
    tile, padded = _row_tile(rows)
    if padded != rows:
        x2d = jnp.pad(x2d, ((0, padded - rows), (0, 0)))
    w_args = [params['patch_ln0_w'], params['patch_ln0_b'],
              params['patch_w'].astype(jnp.bfloat16), params['patch_b'],
              params['patch_ln1_w'], params['patch_ln1_b']]
    out = pl.pallas_call(
        _patch_embed_kernel,
        out_shape=jax.ShapeDtypeStruct((padded, D), jnp.float32),
        grid=(padded // tile,),
        in_specs=[pl.BlockSpec((tile, p), lambda i: (i, 0))] +
                 [pl.BlockSpec(w.shape, lambda i: (0, 0)) for w in w_args],
        out_specs=pl.BlockSpec((tile, D), lambda i: (i, 0)),
        compiler_params=pltpu.CompilerParams(dimension_semantics=("parallel",)),
    )(x2d, *w_args)
    return out[:rows]


def transformer_stack(x, stacked, heads, dim_head, fin_g, fin_b, fin_w, fin_wb):
    """Run the whole layer stack + fused final LN/Linear in one pallas_call."""
    B, T, D = x.shape
    L = stacked['wqkv'].shape[0]
    hidden = stacked['w1'].shape[-1]
    inner = heads * dim_head
    Dout = fin_w.shape[-1]
    # pad seq to sublane multiple; padded keys are masked in-kernel, padded query rows
    # pass a zero row through LayerNorm (finite: (x-mu)=0) and are sliced off below.
    T_pad = _round_up(T, 8)
    if T_pad != T:
        x = jnp.pad(x, ((0, 0), (0, T_pad - T), (0, 0)))
    bs = _pick_seq_block(B, T_pad)

    weights = [stacked[k] for k in _BLOCK_KEYS]
    epi = [fin_g, fin_b, fin_w.astype(jnp.bfloat16), fin_wb]
    kernel = _make_stack_kernel(bs, T_pad, T, D, heads, dim_head, Dout)

    in_specs = [pl.BlockSpec((bs, T_pad, D), lambda i, l: (i, 0, 0))]
    in_specs += [pl.BlockSpec((1,) + w.shape[1:], lambda i, l: (l, 0, 0)) for w in weights]
    in_specs += [pl.BlockSpec(w.shape, lambda i, l: (0, 0)) for w in epi]

    out = pl.pallas_call(
        kernel,
        out_shape=jax.ShapeDtypeStruct((B, T_pad, Dout), jnp.float32),
        grid=(B // bs, L),
        in_specs=in_specs,
        out_specs=pl.BlockSpec((bs, T_pad, Dout), lambda i, l: (i, 0, 0)),
        scratch_shapes=[pltpu.VMEM((bs, T_pad, D), jnp.float32)],
        compiler_params=pltpu.CompilerParams(
            dimension_semantics=("parallel", "arbitrary"),
            vmem_limit_bytes=_stack_vmem_limit(bs, T_pad, D, inner, hidden, Dout)),
    )(x, *weights, *epi)
    return out[:, :T, :] if T_pad != T else out


def masked_mse_loss(pred, target, mask):
    """loss = sum(mask * (pred-target)^2) / sum(mask broadcast over patch dim).

    Lane-dense formulation: broadcast the mask over the patch dim and flatten
    everything to (rows, 128) slabs so stores/loads are unmasked full-lane ops.
    """
    p = pred.shape[-1]
    m_b = jnp.broadcast_to(mask[..., None], pred.shape).astype(jnp.float32)
    pf = pred.reshape(-1).astype(jnp.float32)
    tf = target.reshape(-1).astype(jnp.float32)
    mf = m_b.reshape(-1)

    width = 128
    total = pf.shape[0]
    rows = _round_up(total, width) // width
    pad = rows * width - total
    if pad:
        pf = jnp.pad(pf, (0, pad))
        tf = jnp.pad(tf, (0, pad))
        mf = jnp.pad(mf, (0, pad))
    pf = pf.reshape(rows, width)
    tf = tf.reshape(rows, width)
    mf = mf.reshape(rows, width)

    tile, rows_pad = _row_tile(rows)
    if rows_pad != rows:
        extra = rows_pad - rows
        pf = jnp.pad(pf, ((0, extra), (0, 0)))
        tf = jnp.pad(tf, ((0, extra), (0, 0)))
        mf = jnp.pad(mf, ((0, extra), (0, 0)))

    out = pl.pallas_call(
        _loss_kernel,
        out_shape=jax.ShapeDtypeStruct((1, 1), jnp.float32),
        grid=(rows_pad // tile,),
        in_specs=[pl.BlockSpec((tile, width), lambda i: (i, 0)),
                  pl.BlockSpec((tile, width), lambda i: (i, 0)),
                  pl.BlockSpec((tile, width), lambda i: (i, 0))],
        out_specs=pl.BlockSpec((1, 1), lambda i: (0, 0)),
        scratch_shapes=[pltpu.VMEM((1, 1), jnp.float32),
                        pltpu.VMEM((1, 1), jnp.float32)],
        compiler_params=pltpu.CompilerParams(dimension_semantics=("arbitrary",)),
    )(pf, tf, mf)
    return out[0, 0]


# -----------------------------------------------------------------------------
# Parameter init (deterministic, mirrors the torch module's shapes & init style)
# -----------------------------------------------------------------------------
def init_params(key, cfg):
    p = cfg['patch_size']
    D = cfg['embed_dim']
    Dd = cfg['decoder_embed_dim']
    n = cfg['seq_len'] // p
    c = cfg['num_leads']
    mlp = cfg['mlp_ratio']

    keys = list(jax.random.split(key, 64))
    kit = iter(keys)
    nk = lambda: next(kit)

    def xavier(k, shape):  # weight stored as (in, out); same fan bounds as torch
        bound = math.sqrt(6.0 / (shape[0] + shape[1]))
        return jax.random.uniform(k, shape, jnp.float32, -bound, bound)

    def block_params(dim, heads, dim_head, hidden):
        inner = heads * dim_head
        return dict(
            ln1_w=jnp.ones((1, dim), jnp.float32), ln1_b=jnp.zeros((1, dim), jnp.float32),
            wqkv=xavier(nk(), (dim, 3 * inner)), bqkv=jnp.zeros((1, 3 * inner), jnp.float32),
            wo=xavier(nk(), (inner, dim)), bo=jnp.zeros((1, dim), jnp.float32),
            ln2_w=jnp.ones((1, dim), jnp.float32), ln2_b=jnp.zeros((1, dim), jnp.float32),
            w1=xavier(nk(), (dim, hidden)), b1=jnp.zeros((1, hidden), jnp.float32),
            w2=xavier(nk(), (hidden, dim)), b2=jnp.zeros((1, dim), jnp.float32),
        )

    return dict(
        # patch embedding: Rearrange -> LN(patch) -> Linear(patch, D) -> LN(D)
        patch_ln0_w=jnp.ones((1, p), jnp.float32), patch_ln0_b=jnp.zeros((1, p), jnp.float32),
        patch_w=xavier(nk(), (p, D)), patch_b=jnp.zeros((1, D), jnp.float32),
        patch_ln1_w=jnp.ones((1, D), jnp.float32), patch_ln1_b=jnp.zeros((1, D), jnp.float32),
        pos_embed=get_1d_sincos_pos_embed(D, n, sep_embed=True)[None],          # (1, n+2, D)
        sep_embed=0.02 * jax.random.normal(nk(), (D,), jnp.float32),
        lead_embeds=0.02 * jax.random.normal(nk(), (c, D), jnp.float32),
        enc_blocks=_stack_layer_params(
            [block_params(D, cfg['heads'], cfg['dim_head'], mlp * D)
             for _ in range(cfg['depth'])]),
        enc_norm_w=jnp.ones((1, D), jnp.float32), enc_norm_b=jnp.zeros((1, D), jnp.float32),
        dec_embed_w=xavier(nk(), (D, Dd)), dec_embed_b=jnp.zeros((1, Dd), jnp.float32),
        mask_embed=0.02 * jax.random.normal(nk(), (1, 1, Dd), jnp.float32),
        dec_pos_embed=get_1d_sincos_pos_embed(Dd, n, sep_embed=True)[None],      # (1, n+2, Dd)
        dec_blocks=_stack_layer_params(
            [block_params(Dd, cfg['decoder_heads'], cfg['decoder_dim_head'], mlp * Dd)
             for _ in range(cfg['decoder_depth'])]),
        dec_norm_w=jnp.ones((1, Dd), jnp.float32), dec_norm_b=jnp.zeros((1, Dd), jnp.float32),
        head_w=xavier(nk(), (Dd, p)), head_b=jnp.zeros((1, p), jnp.float32),
    )


# -----------------------------------------------------------------------------
# Forward pass (mirrors ST_MEM.forward: encoder -> decoder -> masked MSE loss)
# -----------------------------------------------------------------------------
def st_mem_forward(params, series, mask_ratio, mask_rng, cfg):
    b, c, L = series.shape
    p = cfg['patch_size']
    n = L // p
    D = cfg['embed_dim']
    Dd = cfg['decoder_embed_dim']

    # ---------------- encoder ----------------
    x_patches = series.reshape(b, c, n, p)                                   # patchify
    x = patch_embed(x_patches.reshape(b * c * n, p), params).reshape(b, c, n, D)

    pos = params['pos_embed']                                                # (1, n+2, D)
    x = x + pos[:, 1:n + 1, :][:, None, :, :]

    if mask_ratio > 0:
        len_keep = int(n * (1 - mask_ratio))
        noise = jax.random.uniform(mask_rng, (b, c, n))                      # torch.rand equivalent
        ids_shuffle = jnp.argsort(noise, axis=2)
        ids_restore = jnp.argsort(ids_shuffle, axis=2)
        ids_keep = ids_shuffle[:, :, :len_keep]
        x = jnp.take_along_axis(
            x, jnp.broadcast_to(ids_keep[..., None], (b, c, len_keep, D)), axis=2)
        mask = jnp.ones((b, c, n), jnp.float32).at[:, :, :len_keep].set(0.0)
        mask = jnp.take_along_axis(mask, ids_restore, axis=2)
    else:
        mask = jnp.zeros((b, c, n), jnp.float32)
        ids_restore = jnp.broadcast_to(jnp.arange(n, dtype=jnp.int32)[None, None, :], (b, c, n))

    sep = params['sep_embed']
    left_sep = jnp.broadcast_to(sep[None, None, None, :], (b, c, 1, D)) + pos[:, :1, :][:, None]
    right_sep = jnp.broadcast_to(sep[None, None, None, :], (b, c, 1, D)) + pos[:, -1:, :][:, None]
    x = jnp.concatenate([left_sep, x, right_sep], axis=2)                    # (b, c, nk+2, D)
    n_sep = x.shape[2]
    x = x + params['lead_embeds'][None, :, None, :]
    x = x.reshape(b, c * n_sep, D)                                           # 'b c n p -> b (c n) p'

    # encoder blocks + (fused) enc_norm + to_decoder_embedding
    x = transformer_stack(x, params['enc_blocks'], cfg['heads'], cfg['dim_head'],
                          params['enc_norm_w'], params['enc_norm_b'],
                          params['dec_embed_w'], params['dec_embed_b'])      # (b, c*n_sep, Dd)
    x = x.reshape(b, c, n_sep, Dd)

    # ---------------- decoder ----------------
    dpos = params['dec_pos_embed']                                           # (1, n+2, Dd)
    n_mask_tok = n + 2 - n_sep
    mask_tokens = jnp.broadcast_to(params['mask_embed'][:, None], (b, c, n_mask_tok, Dd))
    x_wo_sep = jnp.concatenate([x[:, :, 1:-1, :], mask_tokens], axis=2)      # (b, c, n, Dd)
    x_wo_sep = jnp.take_along_axis(
        x_wo_sep, jnp.broadcast_to(ids_restore[..., None], (b, c, n, Dd)), axis=2)
    x_wo_sep = x_wo_sep + dpos[:, 1:n + 1, :][:, None]
    left = x[:, :, :1, :] + dpos[:, :1, :][:, None]
    right = x[:, :, -1:, :] + dpos[:, -1:, :][:, None]
    x = jnp.concatenate([left, x_wo_sep, right], axis=2)                     # (b, c, n+2, Dd)

    # per-lead decoder loop in torch == independent sequences; batch them over (b*c)
    xd = x.reshape(b * c, n + 2, Dd)
    # decoder blocks + (fused) dec_norm + reconstruction head
    xd = transformer_stack(xd, params['dec_blocks'],
                           cfg['decoder_heads'], cfg['decoder_dim_head'],
                           params['dec_norm_w'], params['dec_norm_b'],
                           params['head_w'], params['head_b'])               # (b*c, n+2, p)
    pred = xd.reshape(b, c, n + 2, p)[:, :, 1:-1, :]                         # (b, c, n, patch)

    # ---------------- loss (norm_pix_loss=False) ----------------
    target = series.reshape(b, c, n, p)
    loss = masked_mse_loss(pred, target, mask)

    return {'loss': loss, 'pred': pred, 'mask': mask}


# -----------------------------------------------------------------------------
if __name__ == "__main__":
    cfg = dict(
        seq_len=128, patch_size=16, num_leads=4,
        embed_dim=32, depth=2, heads=2, dim_head=64, mlp_ratio=4,
        decoder_embed_dim=32, decoder_depth=2, decoder_heads=2, decoder_dim_head=64,
    )
    key = jax.random.PRNGKey(0)
    pkey, dkey, mkey = jax.random.split(key, 3)

    params = init_params(pkey, cfg)
    series = jax.random.normal(dkey, (2, cfg['num_leads'], cfg['seq_len']), jnp.float32)

    out = st_mem_forward(params, series, mask_ratio=0.75, mask_rng=mkey, cfg=cfg)
    out = jax.block_until_ready(out)

    n_patches = cfg['seq_len'] // cfg['patch_size']
    assert out['pred'].shape == (2, cfg['num_leads'], n_patches, cfg['patch_size'])
    assert out['mask'].shape == (2, cfg['num_leads'], n_patches)
    assert out['loss'].shape == ()
    assert bool(jnp.isfinite(out['loss']))
    print("KERNEL_OK")
</pallas_src>

<mosaic_0001>
module attributes {stable_mosaic.version = 11 : i64} {
  func.func @_patch_embed_kernel(%arg0: i32, %arg1: memref<64x16xf32, #tpu.memory_space<vmem>>, %arg2: memref<1x16xf32, #tpu.memory_space<vmem>>, %arg3: memref<1x16xf32, #tpu.memory_space<vmem>>, %arg4: memref<16x32xbf16, #tpu.memory_space<vmem>>, %arg5: memref<1x32xf32, #tpu.memory_space<vmem>>, %arg6: memref<1x32xf32, #tpu.memory_space<vmem>>, %arg7: memref<1x32xf32, #tpu.memory_space<vmem>>, %arg8: memref<64x32xf32, #tpu.memory_space<vmem>>) attributes {dimension_semantics = [#tpu.dimension_semantics<parallel>], iteration_bounds = array<i64: 1>, scalar_prefetch = 0 : i64, scratch_operands = 0 : i64, tpu.core_type = #tpu.core_type<tc>, window_params = [{transform_indices = @transform_0, window_bounds = array<i64: 64, 16>}, {pipeline_mode = #tpu.pipeline_mode<synchronous>, transform_indices = @transform_1, window_bounds = array<i64: 1, 16>}, {pipeline_mode = #tpu.pipeline_mode<synchronous>, transform_indices = @transform_2, window_bounds = array<i64: 1, 16>}, {pipeline_mode = #tpu.pipeline_mode<synchronous>, transform_indices = @transform_3, window_bounds = array<i64: 16, 32>}, {pipeline_mode = #tpu.pipeline_mode<synchronous>, transform_indices = @transform_4, window_bounds = array<i64: 1, 32>}, {pipeline_mode = #tpu.pipeline_mode<synchronous>, transform_indices = @transform_5, window_bounds = array<i64: 1, 32>}, {pipeline_mode = #tpu.pipeline_mode<synchronous>, transform_indices = @transform_6, window_bounds = array<i64: 1, 32>}, {transform_indices = @transform_7, window_bounds = array<i64: 64, 32>}]} {
    %c0 = arith.constant 0 : index
    %c0_0 = arith.constant 0 : index
    %0 = vector.load %arg1[%c0, %c0_0] : memref<64x16xf32, #tpu.memory_space<vmem>>, vector<64x16xf32>
    %c0_1 = arith.constant 0 : index
    %c0_2 = arith.constant 0 : index
    %1 = vector.load %arg2[%c0_1, %c0_2] : memref<1x16xf32, #tpu.memory_space<vmem>>, vector<1x16xf32>
    %c0_3 = arith.constant 0 : index
    %c0_4 = arith.constant 0 : index
    %2 = vector.load %arg3[%c0_3, %c0_4] : memref<1x16xf32, #tpu.memory_space<vmem>>, vector<1x16xf32>
    %cst = arith.constant dense<0.000000e+00> : vector<64xf32>
    %3 = vector.multi_reduction <add>, %0, %cst [1] : vector<64x16xf32> to vector<64xf32>
    %4 = vector.shape_cast %3 : vector<64xf32> to vector<64x1xf32>
    %cst_5 = arith.constant 1.600000e+01 : f32
    %5 = vector.broadcast %cst_5 : f32 to vector<64x1xf32>
    %6 = arith.divf %4, %5 : vector<64x1xf32>
    %7 = vector.broadcast %6 : vector<64x1xf32> to vector<64x16xf32>
    %8 = arith.subf %0, %7 : vector<64x16xf32>
    %9 = arith.mulf %8, %8 : vector<64x16xf32>
    %cst_6 = arith.constant dense<0.000000e+00> : vector<64xf32>
    %10 = vector.multi_reduction <add>, %9, %cst_6 [1] : vector<64x16xf32> to vector<64xf32>
    %11 = vector.shape_cast %10 : vector<64xf32> to vector<64x1xf32>
    %cst_7 = arith.constant 1.600000e+01 : f32
    %12 = vector.broadcast %cst_7 : f32 to vector<64x1xf32>
    %13 = arith.divf %11, %12 : vector<64x1xf32>
    %14 = vector.broadcast %6 : vector<64x1xf32> to vector<64x16xf32>
    %15 = arith.subf %0, %14 : vector<64x16xf32>
    %cst_8 = arith.constant 9.99999974E-6 : f32
    %16 = vector.broadcast %cst_8 : f32 to vector<64x1xf32>
    %17 = arith.addf %13, %16 : vector<64x1xf32>
    %18 = math.rsqrt %17 : vector<64x1xf32>
    %19 = vector.broadcast %18 : vector<64x1xf32> to vector<64x16xf32>
    %20 = arith.mulf %15, %19 : vector<64x16xf32>
    %21 = vector.broadcast %1 : vector<1x16xf32> to vector<64x16xf32>
    %22 = arith.mulf %20, %21 : vector<64x16xf32>
    %23 = vector.broadcast %2 : vector<1x16xf32> to vector<64x16xf32>
    %24 = arith.addf %22, %23 : vector<64x16xf32>
    %25 = arith.truncf %24 : vector<64x16xf32> to vector<64x16xbf16>
    %c0_9 = arith.constant 0 : index
    %c0_10 = arith.constant 0 : index
    %26 = vector.load %arg4[%c0_9, %c0_10] : memref<16x32xbf16, #tpu.memory_space<vmem>>, vector<16x32xbf16>
    %cst_11 = arith.constant dense<0.000000e+00> : vector<64x32xf32>
    %27 = tpu.matmul %25, %26, %cst_11 {dimension_numbers = #tpu.dot_dimension_numbers<[1], [0], [0], [1], [0, 0, 1, 1], [], []>} : vector<64x16xbf16>, vector<16x32xbf16>, vector<64x32xf32> -> vector<64x32xf32>
    %c0_12 = arith.constant 0 : index
    %c0_13 = arith.constant 0 : index
    %28 = vector.load %arg5[%c0_12, %c0_13] : memref<1x32xf32, #tpu.memory_space<vmem>>, vector<1x32xf32>
    %29 = vector.broadcast %28 : vector<1x32xf32> to vector<64x32xf32>
    %30 = arith.addf %27, %29 : vector<64x32xf32>
    %c0_14 = arith.constant 0 : index
    %c0_15 = arith.constant 0 : index
    %31 = vector.load %arg6[%c0_14, %c0_15] : memref<1x32xf32, #tpu.memory_space<vmem>>, vector<1x32xf32>
    %c0_16 = arith.constant 0 : index
    %c0_17 = arith.constant 0 : index
    %32 = vector.load %arg7[%c0_16, %c0_17] : memref<1x32xf32, #tpu.memory_space<vmem>>, vector<1x32xf32>
    %cst_18 = arith.constant dense<0.000000e+00> : vector<64xf32>
    %33 = vector.multi_reduction <add>, %30, %cst_18 [1] : vector<64x32xf32> to vector<64xf32>
    %34 = vector.shape_cast %33 : vector<64xf32> to vector<64x1xf32>
    %cst_19 = arith.constant 3.200000e+01 : f32
    %35 = vector.broadcast %cst_19 : f32 to vector<64x1xf32>
    %36 = arith.divf %34, %35 : vector<64x1xf32>
    %37 = vector.broadcast %36 : vector<64x1xf32> to vector<64x32xf32>
    %38 = arith.subf %30, %37 : vector<64x32xf32>
    %39 = arith.mulf %38, %38 : vector<64x32xf32>
    %cst_20 = arith.constant dense<0.000000e+00> : vector<64xf32>
    %40 = vector.multi_reduction <add>, %39, %cst_20 [1] : vector<64x32xf32> to vector<64xf32>
    %41 = vector.shape_cast %40 : vector<64xf32> to vector<64x1xf32>
    %cst_21 = arith.constant 3.200000e+01 : f32
    %42 = vector.broadcast %cst_21 : f32 to vector<64x1xf32>
    %43 = arith.divf %41, %42 : vector<64x1xf32>
    %44 = vector.broadcast %36 : vector<64x1xf32> to vector<64x32xf32>
    %45 = arith.subf %30, %44 : vector<64x32xf32>
    %cst_22 = arith.constant 9.99999974E-6 : f32
    %46 = vector.broadcast %cst_22 : f32 to vector<64x1xf32>
    %47 = arith.addf %43, %46 : vector<64x1xf32>
    %48 = math.rsqrt %47 : vector<64x1xf32>
    %49 = vector.broadcast %48 : vector<64x1xf32> to vector<64x32xf32>
    %50 = arith.mulf %45, %49 : vector<64x32xf32>
    %51 = vector.broadcast %31 : vector<1x32xf32> to vector<64x32xf32>
    %52 = arith.mulf %50, %51 : vector<64x32xf32>
    %53 = vector.broadcast %32 : vector<1x32xf32> to vector<64x32xf32>
    %54 = arith.addf %52, %53 : vector<64x32xf32>
    %c0_23 = arith.constant 0 : index
    %c0_24 = arith.constant 0 : index
    %55 = vector.load %arg8[%c0_23, %c0_24] : memref<64x32xf32, #tpu.memory_space<vmem>>, vector<64x32xf32>
    tpu.vector_store %arg8[%c0_23, %c0_24], %54 {strides = array<i32>} : memref<64x32xf32, #tpu.memory_space<vmem>>, vector<64x32xf32>,
    return
  }
  func.func @transform_0(%arg0: i32) -> (i32, i32) {
    %c0_i32 = arith.constant 0 : i32
    %c0_i32_0 = arith.constant 0 : i32
    return %arg0, %c0_i32 : i32, i32
  }
  func.func @transform_1(%arg0: i32) -> (i32, i32) {
    %c0_i32 = arith.constant 0 : i32
    %c0_i32_0 = arith.constant 0 : i32
    %c0_i32_1 = arith.constant 0 : i32
    return %c0_i32, %c0_i32_0 : i32, i32
  }
  func.func @transform_2(%arg0: i32) -> (i32, i32) {
    %c0_i32 = arith.constant 0 : i32
    %c0_i32_0 = arith.constant 0 : i32
    %c0_i32_1 = arith.constant 0 : i32
    return %c0_i32, %c0_i32_0 : i32, i32
  }
  func.func @transform_3(%arg0: i32) -> (i32, i32) {
    %c0_i32 = arith.constant 0 : i32
    %c0_i32_0 = arith.constant 0 : i32
    %c0_i32_1 = arith.constant 0 : i32
    return %c0_i32, %c0_i32_0 : i32, i32
  }
  func.func @transform_4(%arg0: i32) -> (i32, i32) {
    %c0_i32 = arith.constant 0 : i32
    %c0_i32_0 = arith.constant 0 : i32
    %c0_i32_1 = arith.constant 0 : i32
    return %c0_i32, %c0_i32_0 : i32, i32
  }
  func.func @transform_5(%arg0: i32) -> (i32, i32) {
    %c0_i32 = arith.constant 0 : i32
    %c0_i32_0 = arith.constant 0 : i32
    %c0_i32_1 = arith.constant 0 : i32
    return %c0_i32, %c0_i32_0 : i32, i32
  }
  func.func @transform_6(%arg0: i32) -> (i32, i32) {
    %c0_i32 = arith.constant 0 : i32
    %c0_i32_0 = arith.constant 0 : i32
    %c0_i32_1 = arith.constant 0 : i32
    return %c0_i32, %c0_i32_0 : i32, i32
  }
  func.func @transform_7(%arg0: i32) -> (i32, i32) {
    %c0_i32 = arith.constant 0 : i32
    %c0_i32_0 = arith.constant 0 : i32
    return %arg0, %c0_i32 : i32, i32
  }
}

</mosaic_0001>

<llo_original>
// kernel: tpu_custom_call.1
$region0: #{tpu_custom_call.1}
  #allocation0 [shape = 'u32[]', space=smem, size = 0x4, offset = 0x4, fixed_abs, tag = 'smem constant byte address 0x4 - core index']
  #allocation1 [shape = 'u32[144,128]{1,0:T(1,128)}', space=vmem, size = 0x12000, scoped, tag = 'internal scratch']
  %s0 = inlined_call_operand.vmem [shape: f32[64,16], index: 0, kind: input, shape index: {}]
  %s1 = inlined_call_operand.vmem [shape: f32[1,16], index: 1, kind: input, shape index: {}]
  %s2 = inlined_call_operand.vmem [shape: f32[1,16], index: 2, kind: input, shape index: {}]
  %s3 = inlined_call_operand.vmem [shape: bf16[16,32], index: 3, kind: input, shape index: {}]
  %s4 = inlined_call_operand.vmem [shape: f32[1,32], index: 4, kind: input, shape index: {}]
  %s5 = inlined_call_operand.vmem [shape: f32[1,32], index: 5, kind: input, shape index: {}]
  %s6 = inlined_call_operand.vmem [shape: f32[1,32], index: 6, kind: input, shape index: {}]
  %s7 = inlined_call_operand.vmem [shape: f32[64,32], index: 7, kind: output, shape index: {}]
  %s8 = sld [smem:[#allocation0]]
  $region38: #{tpu_custom_call.1} parent=0
    _
  %s10 = ssub.s32 1, %s8
  %s11 = scalar_select 0, %s10, %s8
  // Predicated region
  $region2: #{tpu_custom_call.1} parent=0 // pred_check
    _
  $region3: #{tpu_custom_call.1} parent=0 // pred_check_branch
    %13 = sbr.rel (0) target = $region5
  $region4: #{tpu_custom_call.1} parent=0 // pred_region
    _
  $region5: #{tpu_custom_call.1} parent=0 // pred_fallthru
    _
  // Predicated region
  $region6: #{tpu_custom_call.1} parent=0 // pred_check
    _
  $region7: #{tpu_custom_call.1} parent=0 // pred_check_branch
    %15 = sbr.rel (0) target = $region9
  $region8: #{tpu_custom_call.1} parent=0 // pred_region
    _
  $region9: #{tpu_custom_call.1} parent=0 // pred_fallthru
    _
  // Predicated region
  $region10: #{tpu_custom_call.1} parent=0 // pred_check
    _
  $region11: #{tpu_custom_call.1} parent=0 // pred_check_branch
    %17 = sbr.rel (0) target = $region13
  $region12: #{tpu_custom_call.1} parent=0 // pred_region
    _
  $region13: #{tpu_custom_call.1} parent=0 // pred_fallthru
    _
  // Predicated region
  $region14: #{tpu_custom_call.1} parent=0 // pred_check
    _
  $region15: #{tpu_custom_call.1} parent=0 // pred_check_branch
    %19 = sbr.rel (0) target = $region17
  $region16: #{tpu_custom_call.1} parent=0 // pred_region
    _
  $region17: #{tpu_custom_call.1} parent=0 // pred_fallthru
    _
  // Predicated region
  $region18: #{tpu_custom_call.1} parent=0 // pred_check
    _
  $region19: #{tpu_custom_call.1} parent=0 // pred_check_branch
    %21 = sbr.rel (0) target = $region21
  $region20: #{tpu_custom_call.1} parent=0 // pred_region
    _
  $region21: #{tpu_custom_call.1} parent=0 // pred_fallthru
    _
  // Predicated region
  $region22: #{tpu_custom_call.1} parent=0 // pred_check
    _
  $region23: #{tpu_custom_call.1} parent=0 // pred_check_branch
    %23 = sbr.rel (0) target = $region25
  $region24: #{tpu_custom_call.1} parent=0 // pred_region
    _
  $region25: #{tpu_custom_call.1} parent=0 // pred_fallthru
    _
  // Predicated region
  $region26: #{tpu_custom_call.1} parent=0 // pred_check
    _
  $region27: #{tpu_custom_call.1} parent=0 // pred_check_branch
    %25 = sbr.rel (0) target = $region29
  $region28: #{tpu_custom_call.1} parent=0 // pred_region
    _
  $region29: #{tpu_custom_call.1} parent=0 // pred_fallthru
    _
  %v27 = vld [vmem:[%s0] sm:$0xff]
  %v28 = vld [vmem:[%s0 + $0x8] sm:$0xff]
  %v29 = vld [vmem:[%s0 + $0x10] sm:$0xff]
  %v30 = vld [vmem:[%s0 + $0x18] sm:$0xff]
  %v31 = vld [vmem:[%s0 + $0x20] sm:$0xff]
  %v32 = vld [vmem:[%s0 + $0x28] sm:$0xff]
  %v33 = vld [vmem:[%s0 + $0x30] sm:$0xff]
  %v34 = vld [vmem:[%s0 + $0x38] sm:$0xff]
  %v35 = vld [vmem:[%s1] sm:$0x1]
  %v36 = vld [vmem:[%s2] sm:$0x1]
  %vm37 = vcmask 130048
  %v38 = vsel %vm37, %v27, 0.0
  %39 = vadd.xlane.f32.xlu0 %v38
  %v40 = vpop.xlane.xlu0 %39
  %v41 = vsel %vm37, %v28, 0.0
  %42 = vadd.xlane.f32.xlu0 %v41
  %v43 = vpop.xlane.xlu0 %42
  %v44 = vsel %vm37, %v29, 0.0
  %45 = vadd.xlane.f32.xlu0 %v44
  %v46 = vpop.xlane.xlu0 %45
  %v47 = vsel %vm37, %v30, 0.0
  %48 = vadd.xlane.f32.xlu0 %v47
  %v49 = vpop.xlane.xlu0 %48
  %v50 = vsel %vm37, %v31, 0.0
  %51 = vadd.xlane.f32.xlu0 %v50
  %v52 = vpop.xlane.xlu0 %51
  %v53 = vsel %vm37, %v32, 0.0
  %54 = vadd.xlane.f32.xlu0 %v53
  %v55 = vpop.xlane.xlu0 %54
  %v56 = vsel %vm37, %v33, 0.0
  %57 = vadd.xlane.f32.xlu0 %v56
  %v58 = vpop.xlane.xlu0 %57
  %v59 = vsel %vm37, %v34, 0.0
  %60 = vadd.xlane.f32.xlu0 %v59
  %v61 = vpop.xlane.xlu0 %60
  %v62 = vrcp.pop 16.0
  %v63 = vmul.f32 %v40, %v62
  %v64 = vmul.f32 %v43, %v62
  %v65 = vmul.f32 %v46, %v62
  %v66 = vmul.f32 %v49, %v62
  %v67 = vmul.f32 %v52, %v62
  %v68 = vmul.f32 %v55, %v62
  %v69 = vmul.f32 %v58, %v62
  %v70 = vmul.f32 %v61, %v62
  %v71 = vsub.f32 %v27, %v63
  %v72 = vsub.f32 %v28, %v64
  %v73 = vsub.f32 %v29, %v65
  %v74 = vsub.f32 %v30, %v66
  %v75 = vsub.f32 %v31, %v67
  %v76 = vsub.f32 %v32, %v68
  %v77 = vsub.f32 %v33, %v69
  %v78 = vsub.f32 %v34, %v70
  %v79 = vmul.f32 %v71, %v71
  %v80 = vmul.f32 %v72, %v72
  %v81 = vmul.f32 %v73, %v73
  %v82 = vmul.f32 %v74, %v74
  %v83 = vmul.f32 %v75, %v75
  %v84 = vmul.f32 %v76, %v76
  %v85 = vmul.f32 %v77, %v77
  %v86 = vmul.f32 %v78, %v78
  %v87 = vsel %vm37, %v79, 0.0
  %88 = vadd.xlane.f32.xlu0 %v87
  %v89 = vpop.xlane.xlu0 %88
  %v90 = vsel %vm37, %v80, 0.0
  %91 = vadd.xlane.f32.xlu0 %v90
  %v92 = vpop.xlane.xlu0 %91
  %v93 = vsel %vm37, %v81, 0.0
  %94 = vadd.xlane.f32.xlu0 %v93
  %v95 = vpop.xlane.xlu0 %94
  %v96 = vsel %vm37, %v82, 0.0
  %97 = vadd.xlane.f32.xlu0 %v96
  %v98 = vpop.xlane.xlu0 %97
  %v99 = vsel %vm37, %v83, 0.0
  %100 = vadd.xlane.f32.xlu0 %v99
  %v101 = vpop.xlane.xlu0 %100
  %v102 = vsel %vm37, %v84, 0.0
  %103 = vadd.xlane.f32.xlu0 %v102
  %v104 = vpop.xlane.xlu0 %103
  %v105 = vsel %vm37, %v85, 0.0
  %106 = vadd.xlane.f32.xlu0 %v105
  %v107 = vpop.xlane.xlu0 %106
  %v108 = vsel %vm37, %v86, 0.0
  %109 = vadd.xlane.f32.xlu0 %v108
  %v110 = vpop.xlane.xlu0 %109
  %v111 = vmul.f32 %v89, %v62
  %v112 = vmul.f32 %v92, %v62
  %v113 = vmul.f32 %v95, %v62
  %v114 = vmul.f32 %v98, %v62
  %v115 = vmul.f32 %v101, %v62
  %v116 = vmul.f32 %v104, %v62
  %v117 = vmul.f32 %v107, %v62
  %v118 = vmul.f32 %v110, %v62
  %v119 = vadd.f32 %v111, 1e-05
  %v120 = vadd.f32 %v112, 1e-05
  %v121 = vadd.f32 %v113, 1e-05
  %v122 = vadd.f32 %v114, 1e-05
  %v123 = vadd.f32 %v115, 1e-05
  %v124 = vadd.f32 %v116, 1e-05
  %v125 = vadd.f32 %v117, 1e-05
  %v126 = vadd.f32 %v118, 1e-05
  %v127 = vrsqrt.pop %v119
  %v128 = vrsqrt.pop %v120
  %v129 = vrsqrt.pop %v121
  %v130 = vrsqrt.pop %v122
  %v131 = vrsqrt.pop %v123
  %v132 = vrsqrt.pop %v124
  %v133 = vrsqrt.pop %v125
  %v134 = vrsqrt.pop %v126
  %v135 = vmul.f32 %v71, %v127
  %v136 = vmul.f32 %v72, %v128
  %v137 = vmul.f32 %v73, %v129
  %v138 = vmul.f32 %v74, %v130
  %v139 = vmul.f32 %v75, %v131
  %v140 = vmul.f32 %v76, %v132
  %v141 = vmul.f32 %v77, %v133
  %v142 = vmul.f32 %v78, %v134
  %v144 = vlaneseq
  %v145 = vshrl.u32 %v144, 7
  %v146 = vsub.s32 0, %v145
  %v147 = vrot.slane %v35, %v146
  %v149 = vmul.f32 %v135, %v147
  %v150 = vmul.f32 %v136, %v147
  %v151 = vmul.f32 %v137, %v147
  %v152 = vmul.f32 %v138, %v147
  %v153 = vmul.f32 %v139, %v147
  %v154 = vmul.f32 %v140, %v147
  %v155 = vmul.f32 %v141, %v147
  %v156 = vmul.f32 %v142, %v147
  %v158 = vlaneseq
  %v159 = vshrl.u32 %v158, 7
  %v160 = vsub.s32 0, %v159
  %v161 = vrot.slane %v36, %v160
  %v163 = vadd.f32 %v149, %v161
  %v164 = vadd.f32 %v150, %v161
  %v165 = vadd.f32 %v151, %v161
  %v166 = vadd.f32 %v152, %v161
  %v167 = vadd.f32 %v153, %v161
  %v168 = vadd.f32 %v154, %v161
  %v169 = vadd.f32 %v155, %v161
  %v170 = vadd.f32 %v156, %v161
  %v171 = vpack.c.bf16 %v164, %v163
  %v172 = vpack.c.bf16 %v166, %v165
  %v173 = vpack.c.bf16 %v168, %v167
  %v174 = vpack.c.bf16 %v170, %v169
  %v175 = vld [vmem:[%s3] sm:$0xf]
  %v176 = vld [vmem:[%s3 + $0x4] sm:$0xf]
  %v177 = vld [vmem:[%s4] sm:$0x1]
  %v179 = vlaneseq
  %v180 = vshrl.u32 %v179, 7
  %v181 = vsub.s32 0, %v180
  %v182 = vrot.slane %v177, %v181
  %v186 = vunpack.c.l.b16 %v175
  %v187 = vunpack.c.l.b16 %v176
  %v188 = vpack.c.b16 %v187, %v186
  %v191 = vsel %vm37, %v171, 0
  %v194 = vsel %vm37, %v172, 0
  %v197 = vsel %vm37, %v173, 0
  %v200 = vsel %vm37, %v174, 0
  %202 = vmatprep.subr.bf16.mxu0 0
  %203 = vmatpush1.bf16.msra.mxu0 0
  %204 = vmatprep.subr.bf16.mxu0 0
  %205 = vmatpush1.bf16.msra.mxu0 0
  %206 = vmatprep.subr.bf16.mxu0 0
  %207 = vmatpush1.bf16.msra.mxu0 0
  %208 = vmatprep.subr.bf16.mxu0 0
  %209 = vmatpush1.bf16.msra.mxu0 0
  %210 = vmatprep.subr.bf16.mxu0 0
  %211 = vmatpush1.bf16.msra.mxu0 0
  %212 = vmatprep.subr.bf16.mxu0 0
  %213 = vmatpush1.bf16.msra.mxu0 0
  %214 = vmatprep.subr.bf16.mxu0 0
  %215 = vmatpush1.bf16.msra.mxu0 0
  %216 = vmatprep.subr.bf16.mxu0 0
  %217 = vmatpush1.bf16.msra.mxu0 %v188
  %218 = vmatprep.subr.bf16.mxu0 0
  %219 = vmatpush2.bf16.msra.mxu0 0
  %220 = vmatprep.subr.bf16.mxu0 0
  %221 = vmatpush2.bf16.msra.mxu0 0
  %222 = vmatprep.subr.bf16.mxu0 0
  %223 = vmatpush2.bf16.msra.mxu0 0
  %224 = vmatprep.subr.bf16.mxu0 0
  %225 = vmatpush2.bf16.msra.mxu0 0
  %226 = vmatprep.subr.bf16.mxu0 0
  %227 = vmatpush2.bf16.msra.mxu0 0
  %228 = vmatprep.subr.bf16.mxu0 0
  %229 = vmatpush2.bf16.msra.mxu0 0
  %230 = vmatprep.subr.bf16.mxu0 0
  %231 = vmatpush2.bf16.msra.mxu0 0
  %232 = vmatprep.subr.bf16.mxu0 0
  %233 = vmatpush2.bf16.msra.mxu0 0
  %234 = vmatprep.mubr.bf16.mxu0 0
  %235 = vmatmul.mubr.bf16.gmra.mxu0 %v191
  %v236 = vpop.f32.mrf.mxu0
  %v237 = vadd.f32 %v182, %v236
  %v238 = vpop.f32.mrf.mxu0
  %v239 = vpop.f32.mrf.mxu0
  %v240 = vadd.f32 %v182, %v239
  %v241 = vpop.f32.mrf.mxu0
  %242 = vmatprep.mubr.bf16.mxu0 0
  %243 = vmatmul.mubr.bf16.gmra.mxu0 %v194
  %v244 = vpop.f32.mrf.mxu0
  %v245 = vadd.f32 %v182, %v244
  %v246 = vpop.f32.mrf.mxu0
  %v247 = vpop.f32.mrf.mxu0
  %v248 = vadd.f32 %v182, %v247
  %v249 = vpop.f32.mrf.mxu0
  %250 = vmatprep.mubr.bf16.mxu0 0
  %251 = vmatmul.mubr.bf16.gmra.mxu0 %v197
  %v252 = vpop.f32.mrf.mxu0
  %v253 = vadd.f32 %v182, %v252
  %v254 = vpop.f32.mrf.mxu0
  %v255 = vpop.f32.mrf.mxu0
  %v256 = vadd.f32 %v182, %v255
  %v257 = vpop.f32.mrf.mxu0
  %258 = vmatprep.mubr.bf16.mxu0 0
  %259 = vmatmul.mubr.bf16.gmra.mxu0 %v200
  %v260 = vpop.f32.mrf.mxu0
  %v261 = vadd.f32 %v182, %v260
  %v262 = vpop.f32.mrf.mxu0
  %v263 = vpop.f32.mrf.mxu0
  %v264 = vadd.f32 %v182, %v263
  %v265 = vpop.f32.mrf.mxu0
  %266 = vdwg.mxu0
  %v267 = vld [vmem:[%s5] sm:$0x1]
  %v268 = vld [vmem:[%s6] sm:$0x1]
  %vm269 = vcmask 261120
  %v270 = vsel %vm269, %v237, 0.0
  %271 = vadd.xlane.f32.xlu0 %v270
  %v272 = vpop.xlane.xlu0 %271
  %v273 = vsel %vm269, %v240, 0.0
  %274 = vadd.xlane.f32.xlu0 %v273
  %v275 = vpop.xlane.xlu0 %274
  %v276 = vsel %vm269, %v245, 0.0
  %277 = vadd.xlane.f32.xlu0 %v276
  %v278 = vpop.xlane.xlu0 %277
  %v279 = vsel %vm269, %v248, 0.0
  %280 = vadd.xlane.f32.xlu0 %v279
  %v281 = vpop.xlane.xlu0 %280
  %v282 = vsel %vm269, %v253, 0.0
  %283 = vadd.xlane.f32.xlu0 %v282
  %v284 = vpop.xlane.xlu0 %283
  %v285 = vsel %vm269, %v256, 0.0
  %286 = vadd.xlane.f32.xlu0 %v285
  %v287 = vpop.xlane.xlu0 %286
  %v288 = vsel %vm269, %v261, 0.0
  %289 = vadd.xlane.f32.xlu0 %v288
  %v290 = vpop.xlane.xlu0 %289
  %v291 = vsel %vm269, %v264, 0.0
  %292 = vadd.xlane.f32.xlu0 %v291
  %v293 = vpop.xlane.xlu0 %292
  %v294 = vrcp.pop 32.0
  %v295 = vmul.f32 %v272, %v294
  %v296 = vmul.f32 %v275, %v294
  %v297 = vmul.f32 %v278, %v294
  %v298 = vmul.f32 %v281, %v294
  %v299 = vmul.f32 %v284, %v294
  %v300 = vmul.f32 %v287, %v294
  %v301 = vmul.f32 %v290, %v294
  %v302 = vmul.f32 %v293, %v294
  %v303 = vsub.f32 %v237, %v295
  %v304 = vsub.f32 %v240, %v296
  %v305 = vsub.f32 %v245, %v297
  %v306 = vsub.f32 %v248, %v298
  %v307 = vsub.f32 %v253, %v299
  %v308 = vsub.f32 %v256, %v300
  %v309 = vsub.f32 %v261, %v301
  %v310 = vsub.f32 %v264, %v302
  %v311 = vmul.f32 %v303, %v303
  %v312 = vmul.f32 %v304, %v304
  %v313 = vmul.f32 %v305, %v305
  %v314 = vmul.f32 %v306, %v306
  %v315 = vmul.f32 %v307, %v307
  %v316 = vmul.f32 %v308, %v308
  %v317 = vmul.f32 %v309, %v309
  %v318 = vmul.f32 %v310, %v310
  %v319 = vsel %vm269, %v311, 0.0
  %320 = vadd.xlane.f32.xlu0 %v319
  %v321 = vpop.xlane.xlu0 %320
  %v322 = vsel %vm269, %v312, 0.0
  %323 = vadd.xlane.f32.xlu0 %v322
  %v324 = vpop.xlane.xlu0 %323
  %v325 = vsel %vm269, %v313, 0.0
  %326 = vadd.xlane.f32.xlu0 %v325
  %v327 = vpop.xlane.xlu0 %326
  %v328 = vsel %vm269, %v314, 0.0
  %329 = vadd.xlane.f32.xlu0 %v328
  %v330 = vpop.xlane.xlu0 %329
  %v331 = vsel %vm269, %v315, 0.0
  %332 = vadd.xlane.f32.xlu0 %v331
  %v333 = vpop.xlane.xlu0 %332
  %v334 = vsel %vm269, %v316, 0.0
  %335 = vadd.xlane.f32.xlu0 %v334
  %v336 = vpop.xlane.xlu0 %335
  %v337 = vsel %vm269, %v317, 0.0
  %338 = vadd.xlane.f32.xlu0 %v337
  %v339 = vpop.xlane.xlu0 %338
  %v340 = vsel %vm269, %v318, 0.0
  %341 = vadd.xlane.f32.xlu0 %v340
  %v342 = vpop.xlane.xlu0 %341
  %v343 = vmul.f32 %v321, %v294
  %v344 = vmul.f32 %v324, %v294
  %v345 = vmul.f32 %v327, %v294
  %v346 = vmul.f32 %v330, %v294
  %v347 = vmul.f32 %v333, %v294
  %v348 = vmul.f32 %v336, %v294
  %v349 = vmul.f32 %v339, %v294
  %v350 = vmul.f32 %v342, %v294
  %v351 = vadd.f32 %v343, 1e-05
  %v352 = vadd.f32 %v344, 1e-05
  %v353 = vadd.f32 %v345, 1e-05
  %v354 = vadd.f32 %v346, 1e-05
  %v355 = vadd.f32 %v347, 1e-05
  %v356 = vadd.f32 %v348, 1e-05
  %v357 = vadd.f32 %v349, 1e-05
  %v358 = vadd.f32 %v350, 1e-05
  %v359 = vrsqrt.pop %v351
  %v360 = vrsqrt.pop %v352
  %v361 = vrsqrt.pop %v353
  %v362 = vrsqrt.pop %v354
  %v363 = vrsqrt.pop %v355
  %v364 = vrsqrt.pop %v356
  %v365 = vrsqrt.pop %v357
  %v366 = vrsqrt.pop %v358
  %v367 = vmul.f32 %v303, %v359
  %v368 = vmul.f32 %v304, %v360
  %v369 = vmul.f32 %v305, %v361
  %v370 = vmul.f32 %v306, %v362
  %v371 = vmul.f32 %v307, %v363
  %v372 = vmul.f32 %v308, %v364
  %v373 = vmul.f32 %v309, %v365
  %v374 = vmul.f32 %v310, %v366
  %v376 = vlaneseq
  %v377 = vshrl.u32 %v376, 7
  %v378 = vsub.s32 0, %v377
  %v379 = vrot.slane %v267, %v378
  %v381 = vmul.f32 %v367, %v379
  %v382 = vmul.f32 %v368, %v379
  %v383 = vmul.f32 %v369, %v379
  %v384 = vmul.f32 %v370, %v379
  %v385 = vmul.f32 %v371, %v379
  %v386 = vmul.f32 %v372, %v379
  %v387 = vmul.f32 %v373, %v379
  %v388 = vmul.f32 %v374, %v379
  %v390 = vlaneseq
  %v391 = vshrl.u32 %v390, 7
  %v392 = vsub.s32 0, %v391
  %v393 = vrot.slane %v268, %v392
  %v395 = vadd.f32 %v381, %v393
  %v396 = vadd.f32 %v382, %v393
  %v397 = vadd.f32 %v383, %v393
  %v398 = vadd.f32 %v384, %v393
  %v399 = vadd.f32 %v385, %v393
  %v400 = vadd.f32 %v386, %v393
  %v401 = vadd.f32 %v387, %v393
  %v402 = vadd.f32 %v388, %v393
  %403 = vst.msk [vmem:[%s7] sm:$0xff] %vm269, %v395
  %404 = vst.msk [vmem:[%s7 + $0x8] sm:$0xff] %vm269, %v396
  %405 = vst.msk [vmem:[%s7 + $0x10] sm:$0xff] %vm269, %v397
  %406 = vst.msk [vmem:[%s7 + $0x18] sm:$0xff] %vm269, %v398
  %407 = vst.msk [vmem:[%s7 + $0x20] sm:$0xff] %vm269, %v399
  %408 = vst.msk [vmem:[%s7 + $0x28] sm:$0xff] %vm269, %v400
  %409 = vst.msk [vmem:[%s7 + $0x30] sm:$0xff] %vm269, %v401
  %410 = vst.msk [vmem:[%s7 + $0x38] sm:$0xff] %vm269, %v402
  // Predicated region
  $region30: #{tpu_custom_call.1} parent=0 // pred_check
    _
  $region31: #{tpu_custom_call.1} parent=0 // pred_check_branch
    %412 = sbr.rel (0) target = $region33
  $region32: #{tpu_custom_call.1} parent=0 // pred_region
    _
  $region33: #{tpu_custom_call.1} parent=0 // pred_fallthru
    _
  // Predicated region
  $region34: #{tpu_custom_call.1} parent=0 // pred_check
    _
  $region35: #{tpu_custom_call.1} parent=0 // pred_check_branch
    %414 = sbr.rel (0) target = $region37
  $region36: #{tpu_custom_call.1} parent=0 // pred_region
    _
  $region37: #{tpu_custom_call.1} parent=0 // pred_fallthru
    _

</llo_original>
